<compile_context>
chip_gen: v6e
topology: v6e:2x2x1
jax: 0.10.0
libtpu: 0.0.40
codegen_flags: <defaults>
</compile_context>

<pallas_src>
import functools
import math

import jax
import jax.numpy as jnp
from jax.experimental import pallas as pl
from jax.experimental.pallas import tpu as pltpu


def _round_up(x: int, m: int) -> int:
    return (x + m - 1) // m * m


def _device_kind() -> str:
    try:
        return jax.devices()[0].device_kind.lower()
    except Exception:
        return ""


def _ntxent_lse_kernel(x_ref, kv_ref, out_ref, z_ref, *,
                       inv_temp: float, n_valid: int, n_pad: int,
                       use_bf16_exp: bool):
    """Per (row-block i, kv-block k) step: accumulate sum_j exp(logits - 1/T).

    Inputs are already L2-normalized (and padded rows are exactly zero), so the
    kernel is a pure matmul + exp + row-sum sweep; the diagonal and the padded
    columns are removed analytically in the finalize step.
    """
    # Grid coordinates are read ONLY here (never inside pl.when bodies).
    k = pl.program_id(1)
    nk = pl.num_programs(1)

    @pl.when(k == 0)
    def _init():
        z_ref[...] = jnp.zeros_like(z_ref)

    # (tq, tkv) block of cosine similarities on the MXU (contract feature dim).
    # Note: default TPU matmul precision (not Precision.HIGHEST); with f32
    # inputs this is f32-class accuracy, with bf16 inputs it is bf16 inputs +
    # f32 accumulation.
    logits = jax.lax.dot_general(
        x_ref[...], kv_ref[...], (((1,), (1,)), ((), ())),
        preferred_element_type=jnp.float32) * inv_temp

    # Fixed-shift exp: cosine logits <= 1/T (up to rounding), so shifting by
    # 1/T never overflows and no running max is needed across kv tiles.
    shifted = logits - inv_temp
    if use_bf16_exp:
        e = jnp.exp(shifted.astype(jnp.bfloat16)).astype(jnp.float32)
    else:
        e = jnp.exp(shifted)
    z_ref[...] = z_ref[...] + jnp.sum(e, axis=-1, keepdims=True)

    @pl.when(k == nk - 1)
    def _finalize():
        xq = x_ref[...].astype(jnp.float32)
        # Analytic self-term removal: logits[i,i] = ||x_i||^2 / T, so its
        # contribution to z is exp((||x_i||^2 - 1)/T) (exact for zero rows too).
        self_term = jnp.exp(
            (jnp.sum(xq * xq, axis=-1, keepdims=True) - 1.0) * inv_temp)
        # Padded rows are exactly zero, so each padded column contributed
        # exp(0 - 1/T): remove all of them with one compile-time constant.
        pad_const = float(n_pad - n_valid) * math.exp(-inv_temp)
        z = z_ref[...] - self_term - pad_const
        out_ref[...] = inv_temp + jnp.log(z)      # logsumexp over j != i


def ntxent_loss(zis, zjs, *, temperature: float = 0.5,
                use_bf16_matmul: bool = True, use_bf16_exp=None,
                tq_target: int = 512, tkv_target: int = 1024):
    """NTXentLoss.forward(zis, zjs) with use_cosine_similarity=True."""
    assert zis.ndim == 2 and zis.shape == zjs.shape
    b, d = zis.shape
    n = 2 * b
    if temperature < 0.03:
        # TODO(synk): very small temperatures need an online-max logsumexp; the
        # fixed-shift formulation below can underflow to -inf there.
        raise NotImplementedError(
            "temperature < 0.03 requires an online-max logsumexp path")
    inv_temp = 1.0 / float(temperature)

    kind = _device_kind()
    old_gen = any(v in kind for v in ("v2", "v3", "v4", "v5"))
    if use_bf16_exp is None:
        # bf16 EUP only pays off on v6e/v7x; keep f32 exp on older chips and
        # whenever the matmul itself runs in f32.
        use_bf16_exp = bool(use_bf16_matmul) and not old_gen

    # --- wrapper-side prep (all O(N*D) XLA ops) -------------------------------
    # Normalize once in f32 with the torch eps clamp; positives are a trivial
    # row-wise dot with the partner half, so they never enter the kernel.
    rep = jnp.concatenate([zjs, zis], axis=0).astype(jnp.float32)     # (N, D)
    norm = jnp.maximum(
        jnp.sqrt(jnp.sum(rep * rep, axis=-1, keepdims=True)), 1e-8)
    xn = rep / norm                                                    # (N, D)
    partner = jnp.concatenate([xn[b:], xn[:b]], axis=0)
    pos = jnp.sum(xn * partner, axis=-1) * inv_temp                    # (N,)

    # --- tile / padding selection (static) ------------------------------------
    tq = min(_round_up(max(tq_target, 8), 8), _round_up(b, 8))    # mult of 8
    n_pad = _round_up(n, tq)
    if "v7" in kind:
        # 2 TensorCores share the "parallel" row axis: make sure there are at
        # least 2 row blocks so megacore is not left idle.
        while n_pad // tq < 2 and tq >= 16:
            tq = _round_up(tq // 2, 8)
            n_pad = _round_up(n, tq)
    tkv = min(_round_up(max(tkv_target, 8), 8), n_pad)
    if n_pad % tkv != 0:
        tkv = tq                                   # tq always divides n_pad
    dp = _round_up(d, 128)                         # MXU contraction dim
    nqb = n_pad // tq
    nkb = n_pad // tkv

    # --- padded, normalized representation fed to the kernel ------------------
    kdtype = jnp.bfloat16 if use_bf16_matmul else jnp.float32
    xpad = jnp.zeros((n_pad, dp), dtype=kdtype)
    xpad = xpad.at[:n, :d].set(xn.astype(kdtype))

    # --- VMEM budget (generation-aware cap) ------------------------------------
    vmem_cap = (100 << 20) if any(v in kind for v in ("v4", "v5", "v6")) \
        else (48 << 20)                            # v7x has 64 MiB per TC
    in_bytes = jnp.dtype(kdtype).itemsize
    est = (2 * tq * dp * in_bytes          # resident q row block (double-buf)
           + 2 * tkv * dp * in_bytes       # streamed kv block (double-buf)
           + 2 * tq * 4 + tq * 4           # output block + z scratch
           + 6 * tq * tkv * 4)             # logits / exp working set
    vmem_limit = int(min(max(2 * est, 32 << 20), vmem_cap))

    kernel = functools.partial(
        _ntxent_lse_kernel, inv_temp=inv_temp, n_valid=n, n_pad=n_pad,
        use_bf16_exp=bool(use_bf16_exp))

    lse_pad = pl.pallas_call(
        kernel,
        out_shape=jax.ShapeDtypeStruct((n_pad, 1), jnp.float32),
        grid_spec=pltpu.PrefetchScalarGridSpec(
            num_scalar_prefetch=0,
            grid=(nqb, nkb),
            in_specs=[
                # resident, pre-normalized query row block
                pl.BlockSpec((tq, dp), lambda i, k: (i, 0)),
                # streamed kv column block
                pl.BlockSpec((tkv, dp), lambda i, k: (k, 0)),
            ],
            out_specs=pl.BlockSpec((tq, 1), lambda i, k: (i, 0)),
            scratch_shapes=[pltpu.VMEM((tq, 1), jnp.float32)],   # running sum
        ),
        compiler_params=pltpu.CompilerParams(
            dimension_semantics=("parallel", "arbitrary"),
            vmem_limit_bytes=vmem_limit),
    )(xpad, xpad)

    lse = lse_pad[:n, 0]
    return jnp.sum(lse - pos) / jnp.float32(n)


def _reference(zis, zjs, temperature=0.5):
    rep = jnp.concatenate([zjs, zis], axis=0).astype(jnp.float32)
    n = rep.shape[0]
    b = n // 2
    norm = jnp.maximum(jnp.linalg.norm(rep, axis=-1, keepdims=True), 1e-8)
    xn = rep / norm
    sim = jnp.matmul(xn, xn.T, precision=jax.lax.Precision.HIGHEST)
    logits = sim / temperature
    idx = jnp.arange(n)
    pos = logits[idx, (idx + b) % n]
    masked = jnp.where(jnp.eye(n, dtype=bool), -jnp.inf, logits)
    lse = jax.scipy.special.logsumexp(masked, axis=-1)
    return jnp.sum(lse - pos) / n


if __name__ == "__main__":
    root = jax.random.PRNGKey(0)

    # 1) Module-sized shape: batch_size=2 (row + feature padding exercised).
    k1, k2 = jax.random.split(root)
    zis = jax.random.normal(k1, (2, 32), jnp.float32)
    zjs = jax.random.normal(k2, (2, 32), jnp.float32)
    ref = _reference(zis, zjs, 0.5)
    out_f32 = jax.block_until_ready(
        ntxent_loss(zis, zjs, temperature=0.5, use_bf16_matmul=False))
    assert jnp.allclose(out_f32, ref, rtol=1e-4, atol=1e-4), (out_f32, ref)
    out_bf16 = jax.block_until_ready(ntxent_loss(zis, zjs, temperature=0.5))
    assert jnp.allclose(out_bf16, ref, rtol=5e-2, atol=5e-2), (out_bf16, ref)

    # 2) Ragged batch: row padding + feature padding + analytic pad correction.
    k3, k4 = jax.random.split(k1)
    zis2 = jax.random.normal(k3, (130, 96), jnp.float32)
    zjs2 = jax.random.normal(k4, (130, 96), jnp.float32)
    ref2 = _reference(zis2, zjs2, 0.5)
    out2 = jax.block_until_ready(
        ntxent_loss(zis2, zjs2, temperature=0.5, use_bf16_matmul=False))
    assert jnp.allclose(out2, ref2, rtol=1e-4, atol=1e-4), (out2, ref2)

    # 3) Multi-block row sweep and multi-step kv reduction, no padding.
    k5, k6 = jax.random.split(k2)
    zis3 = jax.random.normal(k5, (256, 256), jnp.float32)
    zjs3 = jax.random.normal(k6, (256, 256), jnp.float32)
    ref3 = _reference(zis3, zjs3, 0.5)
    out3f = jax.block_until_ready(
        ntxent_loss(zis3, zjs3, temperature=0.5, use_bf16_matmul=False,
                    tq_target=128, tkv_target=128))
    assert jnp.allclose(out3f, ref3, rtol=1e-4, atol=1e-4), (out3f, ref3)
    out3b = jax.block_until_ready(
        ntxent_loss(zis3, zjs3, temperature=0.5,
                    tq_target=128, tkv_target=128))
    assert jnp.allclose(out3b, ref3, rtol=5e-2, atol=5e-2), (out3b, ref3)

    print("KERNEL_OK")
</pallas_src>

<mosaic_0001>
module attributes {stable_mosaic.version = 11 : i64} {
  func.func @_ntxent_lse_kernel(%arg0: i32, %arg1: i32, %arg2: memref<8x128xf32, #tpu.memory_space<vmem>>, %arg3: memref<8x128xf32, #tpu.memory_space<vmem>>, %arg4: memref<8x1xf32, #tpu.memory_space<vmem>>, %arg5: memref<8x1xf32, #tpu.memory_space<vmem>>) attributes {dimension_semantics = [#tpu.dimension_semantics<parallel>, #tpu.dimension_semantics<arbitrary>], iteration_bounds = array<i64: 1, 1>, scalar_prefetch = 0 : i64, scratch_operands = 1 : i64, tpu.core_type = #tpu.core_type<tc>, window_params = [{transform_indices = @transform_0, window_bounds = array<i64: 8, 128>}, {transform_indices = @transform_1, window_bounds = array<i64: 8, 128>}, {transform_indices = @transform_2, window_bounds = array<i64: 8, 1>}]} {
    %c0_i32 = arith.constant 0 : i32
    %0 = arith.cmpi eq, %arg1, %c0_i32 : i32
    %1 = arith.extui %0 : i1 to i32
    %c0_i32_0 = arith.constant 0 : i32
    %2 = arith.cmpi ne, %1, %c0_i32_0 : i32
    scf.if %2 {
      %cst_13 = arith.constant 0.000000e+00 : f32
      %19 = vector.broadcast %cst_13 : f32 to vector<8x1xf32>
      %c0_14 = arith.constant 0 : index
      %c0_15 = arith.constant 0 : index
      %20 = vector.load %arg5[%c0_14, %c0_15] : memref<8x1xf32, #tpu.memory_space<vmem>>, vector<8x1xf32>
      tpu.vector_store %arg5[%c0_14, %c0_15], %19 {strides = array<i32>} : memref<8x1xf32, #tpu.memory_space<vmem>>, vector<8x1xf32>,
    } else {
    }
    %c0 = arith.constant 0 : index
    %c0_1 = arith.constant 0 : index
    %3 = vector.load %arg2[%c0, %c0_1] : memref<8x128xf32, #tpu.memory_space<vmem>>, vector<8x128xf32>
    %c0_2 = arith.constant 0 : index
    %c0_3 = arith.constant 0 : index
    %4 = vector.load %arg3[%c0_2, %c0_3] : memref<8x128xf32, #tpu.memory_space<vmem>>, vector<8x128xf32>
    %cst = arith.constant dense<0.000000e+00> : vector<8x8xf32>
    %5 = tpu.matmul %3, %4, %cst {dimension_numbers = #tpu.dot_dimension_numbers<[1], [1], [0], [0], [0, 0, 1, 0], [], []>} : vector<8x128xf32>, vector<8x128xf32>, vector<8x8xf32> -> vector<8x8xf32>
    %cst_4 = arith.constant 2.000000e+00 : f32
    %6 = vector.broadcast %cst_4 : f32 to vector<8x8xf32>
    %7 = arith.mulf %5, %6 : vector<8x8xf32>
    %cst_5 = arith.constant 2.000000e+00 : f32
    %8 = vector.broadcast %cst_5 : f32 to vector<8x8xf32>
    %9 = arith.subf %7, %8 : vector<8x8xf32>
    %10 = math.exp %9 : vector<8x8xf32>
    %c0_6 = arith.constant 0 : index
    %c0_7 = arith.constant 0 : index
    %11 = vector.load %arg5[%c0_6, %c0_7] : memref<8x1xf32, #tpu.memory_space<vmem>>, vector<8x1xf32>
    %cst_8 = arith.constant dense<0.000000e+00> : vector<8xf32>
    %12 = vector.multi_reduction <add>, %10, %cst_8 [1] : vector<8x8xf32> to vector<8xf32>
    %13 = vector.shape_cast %12 : vector<8xf32> to vector<8x1xf32>
    %14 = arith.addf %11, %13 : vector<8x1xf32>
    %c0_9 = arith.constant 0 : index
    %c0_10 = arith.constant 0 : index
    %15 = vector.load %arg5[%c0_9, %c0_10] : memref<8x1xf32, #tpu.memory_space<vmem>>, vector<8x1xf32>
    tpu.vector_store %arg5[%c0_9, %c0_10], %14 {strides = array<i32>} : memref<8x1xf32, #tpu.memory_space<vmem>>, vector<8x1xf32>,
    %c0_i32_11 = arith.constant 0 : i32
    %16 = arith.cmpi eq, %arg1, %c0_i32_11 : i32
    %17 = arith.extui %16 : i1 to i32
    %c0_i32_12 = arith.constant 0 : i32
    %18 = arith.cmpi ne, %17, %c0_i32_12 : i32
    scf.if %18 {
      %c0_13 = arith.constant 0 : index
      %c0_14 = arith.constant 0 : index
      %19 = vector.load %arg2[%c0_13, %c0_14] : memref<8x128xf32, #tpu.memory_space<vmem>>, vector<8x128xf32>
      %20 = arith.mulf %19, %19 : vector<8x128xf32>
      %cst_15 = arith.constant dense<0.000000e+00> : vector<8xf32>
      %21 = vector.multi_reduction <add>, %20, %cst_15 [1] : vector<8x128xf32> to vector<8xf32>
      %22 = vector.shape_cast %21 : vector<8xf32> to vector<8x1xf32>
      %cst_16 = arith.constant 1.000000e+00 : f32
      %23 = vector.broadcast %cst_16 : f32 to vector<8x1xf32>
      %24 = arith.subf %22, %23 : vector<8x1xf32>
      %cst_17 = arith.constant 2.000000e+00 : f32
      %25 = vector.broadcast %cst_17 : f32 to vector<8x1xf32>
      %26 = arith.mulf %24, %25 : vector<8x1xf32>
      %27 = math.exp %26 : vector<8x1xf32>
      %c0_18 = arith.constant 0 : index
      %c0_19 = arith.constant 0 : index
      %28 = vector.load %arg5[%c0_18, %c0_19] : memref<8x1xf32, #tpu.memory_space<vmem>>, vector<8x1xf32>
      %29 = arith.subf %28, %27 : vector<8x1xf32>
      %cst_20 = arith.constant 0.541341126 : f32
      %30 = vector.broadcast %cst_20 : f32 to vector<8x1xf32>
      %31 = arith.subf %29, %30 : vector<8x1xf32>
      %32 = math.log %31 : vector<8x1xf32>
      %cst_21 = arith.constant 2.000000e+00 : f32
      %33 = vector.broadcast %cst_21 : f32 to vector<8x1xf32>
      %34 = arith.addf %33, %32 : vector<8x1xf32>
      %c0_22 = arith.constant 0 : index
      %c0_23 = arith.constant 0 : index
      %35 = vector.load %arg4[%c0_22, %c0_23] : memref<8x1xf32, #tpu.memory_space<vmem>>, vector<8x1xf32>
      tpu.vector_store %arg4[%c0_22, %c0_23], %34 {strides = array<i32>} : memref<8x1xf32, #tpu.memory_space<vmem>>, vector<8x1xf32>,
    } else {
    }
    return
  }
  func.func @transform_0(%arg0: i32, %arg1: i32) -> (i32, i32) {
    %c0_i32 = arith.constant 0 : i32
    %c0_i32_0 = arith.constant 0 : i32
    return %arg0, %c0_i32 : i32, i32
  }
  func.func @transform_1(%arg0: i32, %arg1: i32) -> (i32, i32) {
    %c0_i32 = arith.constant 0 : i32
    %c0_i32_0 = arith.constant 0 : i32
    return %arg1, %c0_i32 : i32, i32
  }
  func.func @transform_2(%arg0: i32, %arg1: i32) -> (i32, i32) {
    %c0_i32 = arith.constant 0 : i32
    %c0_i32_0 = arith.constant 0 : i32
    return %arg0, %c0_i32 : i32, i32
  }
}

</mosaic_0001>

<llo_original>
// kernel: tpu_custom_call.1
$region0: #{tpu_custom_call.1}
  #allocation0 [shape = 'u32[]', space=smem, size = 0x4, offset = 0x4, fixed_abs, tag = 'smem constant byte address 0x4 - core index']
  #allocation1 [shape = 'u32[144,128]{1,0:T(1,128)}', space=vmem, size = 0x12000, scoped, tag = 'internal scratch']
  #allocation2 [shape = 'f32[8,1]{1,0:T(8,128)}', space=vmem, size = 0x1000, scoped, tag = 'scratch operand']
  %s0 = inlined_call_operand.hbm [shape: f32[8,128], index: 0, kind: input, shape index: {}]
  %s1 = inlined_call_operand.hbm [shape: f32[8,128], index: 1, kind: input, shape index: {}]
  %s2 = inlined_call_operand.vmem [shape: f32[8,1], index: 2, kind: output, shape index: {}]
  %s3 = sld [smem:[#allocation0]]
  $region34: #{tpu_custom_call.1} parent=0
    _
  %s5 = ssub.s32 1, %s3
  %s6 = scalar_select 0, %s5, %s3
  $region1: #{tpu_custom_call.1} parent=0
    #allocation3 [shape = 'u8[4096]{0}', space=vmem, size = 0x1000, scoped, tag = 'input window, operand 0, single buffered']
    #allocation4 [shape = 's32[1]{0}', space=sflag, size = 0x4, scoped, tag = 'scoped memory for tpu_custom_call.1']
    #allocation5 [shape = 'u8[4096]{0}', space=vmem, size = 0x1000, scoped, tag = 'input window, operand 1, single buffered']
    #allocation6 [shape = 's32[1]{0}', space=sflag, size = 0x4, scoped, tag = 'scoped memory for tpu_custom_call.1']
    %7 = vsyncpa [#allocation4], 0
    %8 = vsyncpa [#allocation6], 0
    // Predicated region
    $region2: #{tpu_custom_call.1} parent=1 // pred_check
      _
    $region3: #{tpu_custom_call.1} parent=1 // pred_check_branch
      %10 = sbr.rel (0) target = $region5
    $region4: #{tpu_custom_call.1} parent=1 // pred_region
      %s12 = ssub.s32 128, 128
      %13 = vsyncadd [#allocation4], %s12
      %s15 = sshll.u32 [#allocation3], 4
      %s16 = int_to_ptr.vmem [resolvable:$true] %s15
      %18 = dma.hbm_to_vmem [thread:$0]  %s0, 128, %s16, [#allocation4]
    $region5: #{tpu_custom_call.1} parent=1 // pred_fallthru
      _
    // Predicated region
    $region6: #{tpu_custom_call.1} parent=1 // pred_check
      _
    $region7: #{tpu_custom_call.1} parent=1 // pred_check_branch
      %20 = sbr.rel (0) target = $region9
    $region8: #{tpu_custom_call.1} parent=1 // pred_region
      %s22 = ssub.s32 128, 128
      %23 = vsyncadd [#allocation6], %s22
      %s25 = sshll.u32 [#allocation5], 4
      %s26 = int_to_ptr.vmem [resolvable:$true] %s25
      %28 = dma.hbm_to_vmem [thread:$0]  %s1, 128, %s26, [#allocation6]
    $region9: #{tpu_custom_call.1} parent=1 // pred_fallthru
      _
    // Predicated region
    $region10: #{tpu_custom_call.1} parent=1 // pred_check
      _
    $region11: #{tpu_custom_call.1} parent=1 // pred_check_branch
      %30 = sbr.rel (0) target = $region13
    $region12: #{tpu_custom_call.1} parent=1 // pred_region
      %31 = dma.done [#allocation4], 128
    $region13: #{tpu_custom_call.1} parent=1 // pred_fallthru
      _
    // Predicated region
    $region14: #{tpu_custom_call.1} parent=1 // pred_check
      _
    $region15: #{tpu_custom_call.1} parent=1 // pred_check_branch
      %33 = sbr.rel (0) target = $region17
    $region16: #{tpu_custom_call.1} parent=1 // pred_region
      %34 = dma.done [#allocation6], 128
    $region17: #{tpu_custom_call.1} parent=1 // pred_fallthru
      _
    %p35 = scmp.eq.s32.totalorder 0, 0
    // Predicated region
    $region18: #{tpu_custom_call.1} parent=1 // pred_check
      %p36 = pneg %p35
    $region19: #{tpu_custom_call.1} parent=1 // pred_check_branch
      %38 = sbr.rel (%p36) target = $region21
    $region20: #{tpu_custom_call.1} parent=1 // pred_region
      %vm39 = vcmask 7168
      %40 = vst.msk [vmem:[#allocation2] sm:$0xff] %vm39, 0.0
    $region21: #{tpu_custom_call.1} parent=1 // pred_fallthru
      _
    %v41 = vld [vmem:[#allocation3] sm:$0xff]
    %v42 = vld [vmem:[#allocation5] sm:$0xff]
    %43 = vmatprep.subr.mxu0 0.0
    %44 = vmatpush1.xpose.msra.mxu0 0.0
    %45 = vmatprep.subr.mxu0 0.0
    %46 = vmatpush1.xpose.msra.mxu0 0.0
    %47 = vmatprep.subr.mxu0 0.0
    %48 = vmatpush1.xpose.msra.mxu0 0.0
    %49 = vmatprep.subr.mxu0 0.0
    %50 = vmatpush1.xpose.msra.mxu0 0.0
    %51 = vmatprep.subr.mxu0 0.0
    %52 = vmatpush1.xpose.msra.mxu0 0.0
    %53 = vmatprep.subr.mxu0 0.0
    %54 = vmatpush1.xpose.msra.mxu0 0.0
    %55 = vmatprep.subr.mxu0 0.0
    %56 = vmatpush1.xpose.msra.mxu0 0.0
    %57 = vmatprep.subr.mxu0 0.0
    %58 = vmatpush1.xpose.msra.mxu0 0.0
    %59 = vmatprep.subr.mxu0 0.0
    %60 = vmatpush1.xpose.msra.mxu0 0.0
    %61 = vmatprep.subr.mxu0 0.0
    %62 = vmatpush1.xpose.msra.mxu0 0.0
    %63 = vmatprep.subr.mxu0 0.0
    %64 = vmatpush1.xpose.msra.mxu0 0.0
    %65 = vmatprep.subr.mxu0 0.0
    %66 = vmatpush1.xpose.msra.mxu0 0.0
    %67 = vmatprep.subr.mxu0 0.0
    %68 = vmatpush1.xpose.msra.mxu0 0.0
    %69 = vmatprep.subr.mxu0 0.0
    %70 = vmatpush1.xpose.msra.mxu0 0.0
    %71 = vmatprep.subr.mxu0 0.0
    %72 = vmatpush1.xpose.msra.mxu0 0.0
    %73 = vmatprep.subr.mxu0 0.0
    %74 = vmatpush1.xpose.msra.mxu0 %v42
    %75 = vmatprep.subr.mxu0 0.0
    %76 = vmatpush2.xpose.msra.mxu0 0.0
    %77 = vmatprep.subr.mxu0 0.0
    %78 = vmatpush2.xpose.msra.mxu0 0.0
    %79 = vmatprep.subr.mxu0 0.0
    %80 = vmatpush2.xpose.msra.mxu0 0.0
    %81 = vmatprep.subr.mxu0 0.0
    %82 = vmatpush2.xpose.msra.mxu0 0.0
    %83 = vmatprep.subr.mxu0 0.0
    %84 = vmatpush2.xpose.msra.mxu0 0.0
    %85 = vmatprep.subr.mxu0 0.0
    %86 = vmatpush2.xpose.msra.mxu0 0.0
    %87 = vmatprep.subr.mxu0 0.0
    %88 = vmatpush2.xpose.msra.mxu0 0.0
    %89 = vmatprep.subr.mxu0 0.0
    %90 = vmatpush2.xpose.msra.mxu0 0.0
    %91 = vmatprep.subr.mxu0 0.0
    %92 = vmatpush2.xpose.msra.mxu0 0.0
    %93 = vmatprep.subr.mxu0 0.0
    %94 = vmatpush2.xpose.msra.mxu0 0.0
    %95 = vmatprep.subr.mxu0 0.0
    %96 = vmatpush2.xpose.msra.mxu0 0.0
    %97 = vmatprep.subr.mxu0 0.0
    %98 = vmatpush2.xpose.msra.mxu0 0.0
    %99 = vmatprep.subr.mxu0 0.0
    %100 = vmatpush2.xpose.msra.mxu0 0.0
    %101 = vmatprep.subr.mxu0 0.0
    %102 = vmatpush2.xpose.msra.mxu0 0.0
    %103 = vmatprep.subr.mxu0 0.0
    %104 = vmatpush2.xpose.msra.mxu0 0.0
    %105 = vmatprep.subr.mxu0 0.0
    %106 = vmatpush2.xpose.msra.mxu0 0.0
    %107 = vmatprep.mubr.f32.mxu0 0.0
    %108 = vmatmul.mubr.f32.gmra.mxu0 %v41
    %v109 = vpop.f32.mrf.mxu0
    %v110 = vadd.f32 0.0, %v109
    %v111 = vpop.f32.mrf.mxu0
    %112 = vdwg.mxu0
    %v113 = vmul.f32 %v110, 2.0
    %v114 = vsub.f32 %v113, 2.0
    %v115 = vmul.f32 %v114, 1.442695
    %v116 = vpow.pop %v115
    %v117 = vld [vmem:[#allocation2] sm:$0xff]
    %vm118 = vcmask 64512
    %v119 = vsel %vm118, %v116, 0.0
    %120 = vadd.xlane.f32.xlu0 %v119
    %v121 = vpop.xlane.xlu0 %120
    %v122 = vadd.f32 %v117, %v121
    %vm123 = vcmask 7168
    %124 = vst.msk [vmem:[#allocation2] sm:$0xff] %vm123, %v122
    // Predicated region
    $region22: #{tpu_custom_call.1} parent=1 // pred_check
      %p125 = pneg %p35
    $region23: #{tpu_custom_call.1} parent=1 // pred_check_branch
      %127 = sbr.rel (%p125) target = $region25
    $region24: #{tpu_custom_call.1} parent=1 // pred_region
      %v128 = vld [vmem:[#allocation3] sm:$0xff]
      %v129 = vmul.f32 %v128, %v128
      %130 = vadd.xlane.f32.xlu0 %v129
      %v131 = vpop.xlane.xlu0 %130
      %v132 = vsub.f32 %v131, 1.0
      %v133 = vmul.f32 %v132, 2.0
      %v134 = vmul.f32 %v133, 1.442695
      %v135 = vpow.pop %v134
      %v136 = vld [vmem:[#allocation2] sm:$0xff]
      %v137 = vsub.f32 %v136, %v135
      %v138 = vsub.f32 %v137, 0.5413411
      %v139 = vlog2.pop %v138
      %v140 = vmul.f32 %v139, 0.6931472
      %v141 = vadd.f32 %v140, 2.0
      %142 = vst.msk [vmem:[%s2] sm:$0xff] %vm123, %v141
    $region25: #{tpu_custom_call.1} parent=1 // pred_fallthru
      _
    // Predicated region
    $region26: #{tpu_custom_call.1} parent=1 // pred_check
      _
    $region27: #{tpu_custom_call.1} parent=1 // pred_check_branch
      %144 = sbr.rel (0) target = $region29
    $region28: #{tpu_custom_call.1} parent=1 // pred_region
      _
    $region29: #{tpu_custom_call.1} parent=1 // pred_fallthru
      _
    // Predicated region
    $region30: #{tpu_custom_call.1} parent=1 // pred_check
      _
    $region31: #{tpu_custom_call.1} parent=1 // pred_check_branch
      %146 = sbr.rel (0) target = $region33
    $region32: #{tpu_custom_call.1} parent=1 // pred_region
      _
    $region33: #{tpu_custom_call.1} parent=1 // pred_fallthru
      _
    %147 = vsyncpa [#allocation4], 1
    %148 = vsyncpa [#allocation6], 1

</llo_original>
